<compile_context>
chip_gen: v5e
topology: v5e:2x2
jax: 0.10.0
libtpu: 0.0.40
codegen_flags: <defaults>
</compile_context>

<pallas_src>
import math

import jax
import jax.numpy as jnp
import numpy as np
from jax.experimental import pallas as pl
from jax.experimental.pallas import tpu as pltpu

LEVEL = 5
SUB = 8               # sublanes per f32 vreg
MIN_LANES = 128       # lanes per vreg
LANE_TILE_MAX = 4096  # max lanes per grid block (multiple of 128)


def _round_up(x, m):
    return ((x + m - 1) // m) * m


# each_level_poisson: data-independent constants — Poisson(i) pmf over
# j = 0..i-1, renormalized. Baked into the kernel as python floats.
def _each_level_poisson(level):
    out = []
    for i in range(1, level + 1):
        w = [(float(i) ** j) / math.factorial(j) * math.exp(-float(i)) for j in range(i)]
        s = sum(w)
        out.append([x / s for x in w])
    return out


POISSON_W = _each_level_poisson(LEVEL)
INV_FACT = [1.0 / math.factorial(j) for j in range(LEVEL)]
FACT = [float(math.factorial(j)) for j in range(LEVEL)]


def emitter_kernel(lam_ref, sv11_ref, sv12_ref, sv21_ref, sv22_ref,
                   fv11_ref, fv12_ref, fv21_ref, fv22_ref,
                   ps_sv_ref, ps_fv_ref):
    # All refs are (8, lane_tile) f32 tiles of the lane-dense batch layout.
    lam = lam_ref[...]
    sv11 = sv11_ref[...]; sv12 = sv12_ref[...]
    sv21 = sv21_ref[...]; sv22 = sv22_ref[...]
    fv11 = fv11_ref[...]; fv12 = fv12_ref[...]
    fv21 = fv21_ref[...]; fv22 = fv22_ref[...]

    # Only the logit DIFFERENCE c1 - c2 is ever needed:
    #   d = p0*sv11 + (1-p0)*sv12 - p0*sv21 - (1-p0)*sv22 = p0*ddsv + csv
    ddsv = (sv11 - sv21) - (sv12 - sv22)
    csv = sv12 - sv22
    ddfv = (fv11 - fv21) - (fv12 - fv22)
    cfv = fv12 - fv22

    # Truncated Poisson(lam) weights (unnormalized), generated inside the level
    # loop: pmf_j = lam^j * exp(-lam) / j!, masked by (lam >= j)  (== PyTorch's
    # j <= int(lam) for lam > 0).
    lam_pow = jnp.exp(-lam)        # lam^j * exp(-lam), j starts at 0
    psum = None
    final_sv = None                # sum_i pmf_{i-1} * (c1_i - c2_i)
    final_fv = None
    sv_p0 = []                     # P(choice 1) for opponent levels 1..LEVEL-1
    fv_p0 = []                     # (level-0 prob 0.5 is folded into constants)

    for i in range(1, LEVEL + 1):
        j_top = i - 1
        w = POISSON_W[i - 1]
        # sum_j w[j] == 1  =>  d_i = dd * (sum_j w[j] * p0_j) + c
        s_sv = 0.5 * w[0]          # level-0 opponent prob is the constant 0.5
        s_fv = 0.5 * w[0]
        for j in range(1, i):
            s_sv = s_sv + w[j] * fv_p0[j - 1]
            s_fv = s_fv + w[j] * sv_p0[j - 1]
        d_sv = ddsv * s_sv + csv
        d_fv = ddfv * s_fv + cfv

        pmf = jnp.where(lam >= float(j_top), lam_pow * INV_FACT[j_top], 0.0)
        if i == 1:
            psum = pmf
            final_sv = pmf * d_sv
            final_fv = pmf * d_fv
        else:
            psum = psum + pmf
            final_sv = final_sv + pmf * d_sv
            final_fv = final_fv + pmf * d_fv

        if i < LEVEL:
            # per-level 2-way softmax -> sigmoid(d), tanh-based (EUP-native)
            sv_p0.append(0.5 + 0.5 * jnp.tanh(0.5 * d_sv))
            fv_p0.append(0.5 + 0.5 * jnp.tanh(0.5 * d_fv))
            lam_pow = lam_pow * lam

    # 1/psum: approx reciprocal + one Newton-Raphson step (~f32-exact).
    inv = pl.reciprocal(psum, approx=True)
    inv = inv * (2.0 - psum * inv)

    # ps = softmax([C1, C2])[:, 1] = sigmoid(-(C1 - C2))
    ps_sv_ref[...] = 0.5 - 0.5 * jnp.tanh(0.5 * (final_sv * inv))
    ps_fv_ref[...] = 0.5 - 0.5 * jnp.tanh(0.5 * (final_fv * inv))


def init_emitter_params(key, hid_dim=16):
    """Deterministic init of the (unused-in-forward) Linear layers, for shape fidelity."""
    ks = jax.random.split(key, 12)

    def lin(kw, kb, fan_in, fan_out):
        lim = 1.0 / math.sqrt(fan_in)
        w = jax.random.uniform(kw, (fan_out, fan_in), jnp.float32, -lim, lim)
        b = jax.random.uniform(kb, (fan_out,), jnp.float32, -lim, lim)
        return {"w": w, "b": b}

    return {
        "sv_l": [lin(ks[0], ks[1], 12, hid_dim), lin(ks[2], ks[3], hid_dim, 2)],
        "fv_l": [lin(ks[4], ks[5], 12, hid_dim), lin(ks[6], ks[7], hid_dim, 2)],
        "ad_sv": lin(ks[8], ks[9], 14, 1),
        "ad_fv": lin(ks[10], ks[11], 14, 1),
    }


def emitter_forward(params, l_t, o_t,
                    sv_c11, sv_c12, sv_c21, sv_c22,
                    fv_c11, fv_c12, fv_c21, fv_c22):
    # params / o_t are unused in the PyTorch forward as well.
    # TODO(synk): sv_l/fv_l/ad_sv/ad_fv Linear layers are dead code in forward();
    # initialized for fidelity only, never applied.
    del params, o_t
    B = l_t.shape[0]

    # Lane-dense layout: B elements -> (8, L) row-major.  Zero-copy reshape when
    # B % 8 == 0 and B >= 1024; otherwise a single minimal pad (zeros -> padded
    # lanes compute a harmless 0.5 and are sliced off).
    if B % SUB == 0 and B >= SUB * MIN_LANES:
        B_pad = B
    else:
        B_pad = _round_up(max(B, SUB * MIN_LANES), SUB * MIN_LANES)
    L = B_pad // SUB

    def prep(x):
        v = jnp.asarray(x, jnp.float32).reshape(-1)
        if B_pad != B:
            v = jnp.pad(v, (0, B_pad - B))
        return v.reshape(SUB, L)

    ins = [prep(x) for x in (l_t, sv_c11, sv_c12, sv_c21, sv_c22,
                             fv_c11, fv_c12, fv_c21, fv_c22)]

    # Lane tiling: keep blocks large (amortize per-step overhead) but keep the
    # grid >= 2 whenever there is enough work (v7x has two TensorCores).
    if L <= 2 * MIN_LANES:
        lane_tile = L                                      # single full-extent block
    else:
        lane_tile = min(LANE_TILE_MAX, _round_up(pl.cdiv(L, 2), MIN_LANES))
    n_blocks = pl.cdiv(L, lane_tile)

    spec = pl.BlockSpec((SUB, lane_tile), lambda k: (0, k))
    out_sv, out_fv = pl.pallas_call(
        emitter_kernel,
        out_shape=(jax.ShapeDtypeStruct((SUB, L), jnp.float32),
                   jax.ShapeDtypeStruct((SUB, L), jnp.float32)),
        grid=(n_blocks,),
        in_specs=[spec] * 9,
        out_specs=(spec, spec),
        compiler_params=pltpu.CompilerParams(
            dimension_semantics=("parallel",)),
    )(*ins)

    def unpack(o):
        flat = o.reshape(-1)
        if B_pad != B:
            flat = flat[:B]
        return flat.reshape(B, 1)

    return unpack(out_sv), unpack(out_fv)


# ------------------------- pure-JAX reference ------------------------------
def emitter_reference(l_t, sv11, sv12, sv21, sv22, fv11, fv12, fv21, fv22):
    lam = l_t.reshape(-1).astype(jnp.float32)           # (B,)
    payoffs = [x.reshape(-1).astype(jnp.float32)
               for x in (sv11, sv12, sv21, sv22, fv11, fv12, fv21, fv22)]
    sv11, sv12, sv21, sv22, fv11, fv12, fv21, fv22 = payoffs

    floor_lam = jnp.floor(lam)
    p_raw = []
    for j in range(LEVEL):
        pmf = lam ** j / FACT[j] * jnp.exp(-lam)
        pmf = jnp.where(j <= floor_lam, pmf, 0.0)
        p_raw.append(pmf)
    psum = sum(p_raw)
    p_level = [pj / psum for pj in p_raw]

    half = jnp.full_like(lam, 0.5)
    sv_prob, fv_prob = [(half, half)], [(half, half)]
    svc1, svc2, fvc1, fvc2 = [], [], [], []
    for i in range(1, LEVEL + 1):
        w = POISSON_W[i - 1]
        a = b = c = d = jnp.zeros_like(lam)
        for j in range(i):
            fp0, fp1 = fv_prob[j]
            sp0, sp1 = sv_prob[j]
            a = a + w[j] * (fp0 * sv11 + fp1 * sv12)
            b = b + w[j] * (fp0 * sv21 + fp1 * sv22)
            c = c + w[j] * (sp0 * fv11 + sp1 * fv12)
            d = d + w[j] * (sp0 * fv21 + sp1 * fv22)
        svc1.append(a); svc2.append(b); fvc1.append(c); fvc2.append(d)
        pr = jax.nn.softmax(jnp.stack([a, b], -1), -1)
        sv_prob.append((pr[:, 0], pr[:, 1]))
        pr = jax.nn.softmax(jnp.stack([c, d], -1), -1)
        fv_prob.append((pr[:, 0], pr[:, 1]))

    sv_l1 = sum(p_level[k] * svc1[k] for k in range(LEVEL))
    sv_l2 = sum(p_level[k] * svc2[k] for k in range(LEVEL))
    fv_l1 = sum(p_level[k] * fvc1[k] for k in range(LEVEL))
    fv_l2 = sum(p_level[k] * fvc2[k] for k in range(LEVEL))
    ps_sv = jax.nn.softmax(jnp.stack([sv_l1, sv_l2], -1), -1)[:, 1:2]
    ps_fv = jax.nn.softmax(jnp.stack([fv_l1, fv_l2], -1), -1)[:, 1:2]
    return ps_sv, ps_fv


def _make_inputs(key, B):
    ks = jax.random.split(key, 10)
    return dict(
        l_t=jax.random.uniform(ks[0], (B, 1), jnp.float32, 0.5, 4.5),  # Poisson rate > 0
        o_t=jax.random.normal(ks[1], (B, 14), jnp.float32),            # unused in forward
        sv_c11=jax.random.normal(ks[2], (B, 1), jnp.float32),
        sv_c12=jax.random.normal(ks[3], (B, 1), jnp.float32),
        sv_c21=jax.random.normal(ks[4], (B, 1), jnp.float32),
        sv_c22=jax.random.normal(ks[5], (B, 1), jnp.float32),
        fv_c11=jax.random.normal(ks[6], (B, 1), jnp.float32),
        fv_c12=jax.random.normal(ks[7], (B, 1), jnp.float32),
        fv_c21=jax.random.normal(ks[8], (B, 1), jnp.float32),
        fv_c22=jax.random.normal(ks[9], (B, 1), jnp.float32),
    )


if __name__ == "__main__":
    key = jax.random.PRNGKey(0)
    kp, k0, k1, k2 = jax.random.split(key, 4)
    params = init_emitter_params(kp, hid_dim=16)

    # B=8   : tiny batch (padded to one (8,128) block, grid=1)
    # B=2600: zero-copy reshape path, grid=2, ragged last lane block
    # B=4100: unaligned batch -> minimal pad path, grid=2
    for kk, B in ((k0, 8), (k1, 2600), (k2, 4100)):
        inp = _make_inputs(kk, B)
        ps_sv, ps_fv = emitter_forward(
            params, inp["l_t"], inp["o_t"],
            inp["sv_c11"], inp["sv_c12"], inp["sv_c21"], inp["sv_c22"],
            inp["fv_c11"], inp["fv_c12"], inp["fv_c21"], inp["fv_c22"])
        jax.block_until_ready((ps_sv, ps_fv))

        ref_sv, ref_fv = emitter_reference(
            inp["l_t"],
            inp["sv_c11"], inp["sv_c12"], inp["sv_c21"], inp["sv_c22"],
            inp["fv_c11"], inp["fv_c12"], inp["fv_c21"], inp["fv_c22"])
        np.testing.assert_allclose(np.asarray(ps_sv), np.asarray(ref_sv),
                                   rtol=2e-5, atol=2e-5)
        np.testing.assert_allclose(np.asarray(ps_fv), np.asarray(ref_fv),
                                   rtol=2e-5, atol=2e-5)
        assert ps_sv.shape == (B, 1) and ps_fv.shape == (B, 1)

    print("KERNEL_OK")
</pallas_src>

<mosaic_0001>
module attributes {stable_mosaic.version = 11 : i64} {
  func.func @emitter_kernel(%arg0: i32, %arg1: memref<8x128xf32, #tpu.memory_space<vmem>>, %arg2: memref<8x128xf32, #tpu.memory_space<vmem>>, %arg3: memref<8x128xf32, #tpu.memory_space<vmem>>, %arg4: memref<8x128xf32, #tpu.memory_space<vmem>>, %arg5: memref<8x128xf32, #tpu.memory_space<vmem>>, %arg6: memref<8x128xf32, #tpu.memory_space<vmem>>, %arg7: memref<8x128xf32, #tpu.memory_space<vmem>>, %arg8: memref<8x128xf32, #tpu.memory_space<vmem>>, %arg9: memref<8x128xf32, #tpu.memory_space<vmem>>, %arg10: memref<8x128xf32, #tpu.memory_space<vmem>>, %arg11: memref<8x128xf32, #tpu.memory_space<vmem>>) attributes {dimension_semantics = [#tpu.dimension_semantics<parallel>], iteration_bounds = array<i64: 1>, scalar_prefetch = 0 : i64, scratch_operands = 0 : i64, tpu.core_type = #tpu.core_type<tc>, window_params = [{transform_indices = @transform_0, window_bounds = array<i64: 8, 128>}, {transform_indices = @transform_1, window_bounds = array<i64: 8, 128>}, {transform_indices = @transform_2, window_bounds = array<i64: 8, 128>}, {transform_indices = @transform_3, window_bounds = array<i64: 8, 128>}, {transform_indices = @transform_4, window_bounds = array<i64: 8, 128>}, {transform_indices = @transform_5, window_bounds = array<i64: 8, 128>}, {transform_indices = @transform_6, window_bounds = array<i64: 8, 128>}, {transform_indices = @transform_7, window_bounds = array<i64: 8, 128>}, {transform_indices = @transform_8, window_bounds = array<i64: 8, 128>}, {transform_indices = @transform_9, window_bounds = array<i64: 8, 128>}, {transform_indices = @transform_10, window_bounds = array<i64: 8, 128>}]} {
    %c0 = arith.constant 0 : index
    %c0_0 = arith.constant 0 : index
    %0 = vector.load %arg1[%c0, %c0_0] : memref<8x128xf32, #tpu.memory_space<vmem>>, vector<8x128xf32>
    %c0_1 = arith.constant 0 : index
    %c0_2 = arith.constant 0 : index
    %1 = vector.load %arg2[%c0_1, %c0_2] : memref<8x128xf32, #tpu.memory_space<vmem>>, vector<8x128xf32>
    %c0_3 = arith.constant 0 : index
    %c0_4 = arith.constant 0 : index
    %2 = vector.load %arg3[%c0_3, %c0_4] : memref<8x128xf32, #tpu.memory_space<vmem>>, vector<8x128xf32>
    %c0_5 = arith.constant 0 : index
    %c0_6 = arith.constant 0 : index
    %3 = vector.load %arg4[%c0_5, %c0_6] : memref<8x128xf32, #tpu.memory_space<vmem>>, vector<8x128xf32>
    %c0_7 = arith.constant 0 : index
    %c0_8 = arith.constant 0 : index
    %4 = vector.load %arg5[%c0_7, %c0_8] : memref<8x128xf32, #tpu.memory_space<vmem>>, vector<8x128xf32>
    %c0_9 = arith.constant 0 : index
    %c0_10 = arith.constant 0 : index
    %5 = vector.load %arg6[%c0_9, %c0_10] : memref<8x128xf32, #tpu.memory_space<vmem>>, vector<8x128xf32>
    %c0_11 = arith.constant 0 : index
    %c0_12 = arith.constant 0 : index
    %6 = vector.load %arg7[%c0_11, %c0_12] : memref<8x128xf32, #tpu.memory_space<vmem>>, vector<8x128xf32>
    %c0_13 = arith.constant 0 : index
    %c0_14 = arith.constant 0 : index
    %7 = vector.load %arg8[%c0_13, %c0_14] : memref<8x128xf32, #tpu.memory_space<vmem>>, vector<8x128xf32>
    %c0_15 = arith.constant 0 : index
    %c0_16 = arith.constant 0 : index
    %8 = vector.load %arg9[%c0_15, %c0_16] : memref<8x128xf32, #tpu.memory_space<vmem>>, vector<8x128xf32>
    %9 = arith.subf %1, %3 : vector<8x128xf32>
    %10 = arith.subf %2, %4 : vector<8x128xf32>
    %11 = arith.subf %9, %10 : vector<8x128xf32>
    %12 = arith.subf %2, %4 : vector<8x128xf32>
    %13 = arith.subf %5, %7 : vector<8x128xf32>
    %14 = arith.subf %6, %8 : vector<8x128xf32>
    %15 = arith.subf %13, %14 : vector<8x128xf32>
    %16 = arith.subf %6, %8 : vector<8x128xf32>
    %cst = arith.constant 0.000000e+00 : f32
    %17 = vector.broadcast %cst : f32 to vector<8x128xf32>
    %18 = arith.subf %17, %0 : vector<8x128xf32>
    %19 = math.exp %18 : vector<8x128xf32>
    %cst_17 = arith.constant 5.000000e-01 : f32
    %20 = vector.broadcast %cst_17 : f32 to vector<8x128xf32>
    %21 = arith.mulf %11, %20 : vector<8x128xf32>
    %22 = arith.addf %21, %12 : vector<8x128xf32>
    %cst_18 = arith.constant 5.000000e-01 : f32
    %23 = vector.broadcast %cst_18 : f32 to vector<8x128xf32>
    %24 = arith.mulf %15, %23 : vector<8x128xf32>
    %25 = arith.addf %24, %16 : vector<8x128xf32>
    %cst_19 = arith.constant 0.000000e+00 : f32
    %26 = vector.broadcast %cst_19 : f32 to vector<8x128xf32>
    %27 = arith.cmpf oge, %0, %26 : vector<8x128xf32>
    %cst_20 = arith.constant 1.000000e+00 : f32
    %28 = vector.broadcast %cst_20 : f32 to vector<8x128xf32>
    %29 = arith.mulf %19, %28 : vector<8x128xf32>
    %cst_21 = arith.constant 0.000000e+00 : f32
    %30 = vector.broadcast %cst_21 : f32 to vector<8x128xf32>
    %31 = arith.select %27, %29, %30 : vector<8x128xi1>, vector<8x128xf32>
    %32 = arith.mulf %31, %22 : vector<8x128xf32>
    %33 = arith.mulf %31, %25 : vector<8x128xf32>
    %cst_22 = arith.constant 5.000000e-01 : f32
    %34 = vector.broadcast %cst_22 : f32 to vector<8x128xf32>
    %35 = arith.mulf %34, %22 : vector<8x128xf32>
    %36 = math.tanh %35 : vector<8x128xf32>
    %cst_23 = arith.constant 5.000000e-01 : f32
    %37 = vector.broadcast %cst_23 : f32 to vector<8x128xf32>
    %38 = arith.mulf %37, %36 : vector<8x128xf32>
    %cst_24 = arith.constant 5.000000e-01 : f32
    %39 = vector.broadcast %cst_24 : f32 to vector<8x128xf32>
    %40 = arith.addf %39, %38 : vector<8x128xf32>
    %cst_25 = arith.constant 5.000000e-01 : f32
    %41 = vector.broadcast %cst_25 : f32 to vector<8x128xf32>
    %42 = arith.mulf %41, %25 : vector<8x128xf32>
    %43 = math.tanh %42 : vector<8x128xf32>
    %cst_26 = arith.constant 5.000000e-01 : f32
    %44 = vector.broadcast %cst_26 : f32 to vector<8x128xf32>
    %45 = arith.mulf %44, %43 : vector<8x128xf32>
    %cst_27 = arith.constant 5.000000e-01 : f32
    %46 = vector.broadcast %cst_27 : f32 to vector<8x128xf32>
    %47 = arith.addf %46, %45 : vector<8x128xf32>
    %48 = arith.mulf %19, %0 : vector<8x128xf32>
    %cst_28 = arith.constant 0.666666686 : f32
    %49 = vector.broadcast %cst_28 : f32 to vector<8x128xf32>
    %50 = arith.mulf %49, %47 : vector<8x128xf32>
    %cst_29 = arith.constant 0.166666672 : f32
    %51 = vector.broadcast %cst_29 : f32 to vector<8x128xf32>
    %52 = arith.addf %51, %50 : vector<8x128xf32>
    %cst_30 = arith.constant 0.666666686 : f32
    %53 = vector.broadcast %cst_30 : f32 to vector<8x128xf32>
    %54 = arith.mulf %53, %40 : vector<8x128xf32>
    %cst_31 = arith.constant 0.166666672 : f32
    %55 = vector.broadcast %cst_31 : f32 to vector<8x128xf32>
    %56 = arith.addf %55, %54 : vector<8x128xf32>
    %57 = arith.mulf %11, %52 : vector<8x128xf32>
    %58 = arith.addf %57, %12 : vector<8x128xf32>
    %59 = arith.mulf %15, %56 : vector<8x128xf32>
    %60 = arith.addf %59, %16 : vector<8x128xf32>
    %cst_32 = arith.constant 1.000000e+00 : f32
    %61 = vector.broadcast %cst_32 : f32 to vector<8x128xf32>
    %62 = arith.cmpf oge, %0, %61 : vector<8x128xf32>
    %cst_33 = arith.constant 1.000000e+00 : f32
    %63 = vector.broadcast %cst_33 : f32 to vector<8x128xf32>
    %64 = arith.mulf %48, %63 : vector<8x128xf32>
    %cst_34 = arith.constant 0.000000e+00 : f32
    %65 = vector.broadcast %cst_34 : f32 to vector<8x128xf32>
    %66 = arith.select %62, %64, %65 : vector<8x128xi1>, vector<8x128xf32>
    %67 = arith.addf %31, %66 : vector<8x128xf32>
    %68 = arith.mulf %66, %58 : vector<8x128xf32>
    %69 = arith.addf %32, %68 : vector<8x128xf32>
    %70 = arith.mulf %66, %60 : vector<8x128xf32>
    %71 = arith.addf %33, %70 : vector<8x128xf32>
    %cst_35 = arith.constant 5.000000e-01 : f32
    %72 = vector.broadcast %cst_35 : f32 to vector<8x128xf32>
    %73 = arith.mulf %72, %58 : vector<8x128xf32>
    %74 = math.tanh %73 : vector<8x128xf32>
    %cst_36 = arith.constant 5.000000e-01 : f32
    %75 = vector.broadcast %cst_36 : f32 to vector<8x128xf32>
    %76 = arith.mulf %75, %74 : vector<8x128xf32>
    %cst_37 = arith.constant 5.000000e-01 : f32
    %77 = vector.broadcast %cst_37 : f32 to vector<8x128xf32>
    %78 = arith.addf %77, %76 : vector<8x128xf32>
    %cst_38 = arith.constant 5.000000e-01 : f32
    %79 = vector.broadcast %cst_38 : f32 to vector<8x128xf32>
    %80 = arith.mulf %79, %60 : vector<8x128xf32>
    %81 = math.tanh %80 : vector<8x128xf32>
    %cst_39 = arith.constant 5.000000e-01 : f32
    %82 = vector.broadcast %cst_39 : f32 to vector<8x128xf32>
    %83 = arith.mulf %82, %81 : vector<8x128xf32>
    %cst_40 = arith.constant 5.000000e-01 : f32
    %84 = vector.broadcast %cst_40 : f32 to vector<8x128xf32>
    %85 = arith.addf %84, %83 : vector<8x128xf32>
    %86 = arith.mulf %48, %0 : vector<8x128xf32>
    %cst_41 = arith.constant 0.352941185 : f32
    %87 = vector.broadcast %cst_41 : f32 to vector<8x128xf32>
    %88 = arith.mulf %87, %47 : vector<8x128xf32>
    %cst_42 = arith.constant 0.0588235296 : f32
    %89 = vector.broadcast %cst_42 : f32 to vector<8x128xf32>
    %90 = arith.addf %89, %88 : vector<8x128xf32>
    %cst_43 = arith.constant 0.352941185 : f32
    %91 = vector.broadcast %cst_43 : f32 to vector<8x128xf32>
    %92 = arith.mulf %91, %40 : vector<8x128xf32>
    %cst_44 = arith.constant 0.0588235296 : f32
    %93 = vector.broadcast %cst_44 : f32 to vector<8x128xf32>
    %94 = arith.addf %93, %92 : vector<8x128xf32>
    %cst_45 = arith.constant 0.529411793 : f32
    %95 = vector.broadcast %cst_45 : f32 to vector<8x128xf32>
    %96 = arith.mulf %95, %85 : vector<8x128xf32>
    %97 = arith.addf %90, %96 : vector<8x128xf32>
    %cst_46 = arith.constant 0.529411793 : f32
    %98 = vector.broadcast %cst_46 : f32 to vector<8x128xf32>
    %99 = arith.mulf %98, %78 : vector<8x128xf32>
    %100 = arith.addf %94, %99 : vector<8x128xf32>
    %101 = arith.mulf %11, %97 : vector<8x128xf32>
    %102 = arith.addf %101, %12 : vector<8x128xf32>
    %103 = arith.mulf %15, %100 : vector<8x128xf32>
    %104 = arith.addf %103, %16 : vector<8x128xf32>
    %cst_47 = arith.constant 2.000000e+00 : f32
    %105 = vector.broadcast %cst_47 : f32 to vector<8x128xf32>
    %106 = arith.cmpf oge, %0, %105 : vector<8x128xf32>
    %cst_48 = arith.constant 5.000000e-01 : f32
    %107 = vector.broadcast %cst_48 : f32 to vector<8x128xf32>
    %108 = arith.mulf %86, %107 : vector<8x128xf32>
    %cst_49 = arith.constant 0.000000e+00 : f32
    %109 = vector.broadcast %cst_49 : f32 to vector<8x128xf32>
    %110 = arith.select %106, %108, %109 : vector<8x128xi1>, vector<8x128xf32>
    %111 = arith.addf %67, %110 : vector<8x128xf32>
    %112 = arith.mulf %110, %102 : vector<8x128xf32>
    %113 = arith.addf %69, %112 : vector<8x128xf32>
    %114 = arith.mulf %110, %104 : vector<8x128xf32>
    %115 = arith.addf %71, %114 : vector<8x128xf32>
    %cst_50 = arith.constant 5.000000e-01 : f32
    %116 = vector.broadcast %cst_50 : f32 to vector<8x128xf32>
    %117 = arith.mulf %116, %102 : vector<8x128xf32>
    %118 = math.tanh %117 : vector<8x128xf32>
    %cst_51 = arith.constant 5.000000e-01 : f32
    %119 = vector.broadcast %cst_51 : f32 to vector<8x128xf32>
    %120 = arith.mulf %119, %118 : vector<8x128xf32>
    %cst_52 = arith.constant 5.000000e-01 : f32
    %121 = vector.broadcast %cst_52 : f32 to vector<8x128xf32>
    %122 = arith.addf %121, %120 : vector<8x128xf32>
    %cst_53 = arith.constant 5.000000e-01 : f32
    %123 = vector.broadcast %cst_53 : f32 to vector<8x128xf32>
    %124 = arith.mulf %123, %104 : vector<8x128xf32>
    %125 = math.tanh %124 : vector<8x128xf32>
    %cst_54 = arith.constant 5.000000e-01 : f32
    %126 = vector.broadcast %cst_54 : f32 to vector<8x128xf32>
    %127 = arith.mulf %126, %125 : vector<8x128xf32>
    %cst_55 = arith.constant 5.000000e-01 : f32
    %128 = vector.broadcast %cst_55 : f32 to vector<8x128xf32>
    %129 = arith.addf %128, %127 : vector<8x128xf32>
    %130 = arith.mulf %86, %0 : vector<8x128xf32>
    %cst_56 = arith.constant 0.169014081 : f32
    %131 = vector.broadcast %cst_56 : f32 to vector<8x128xf32>
    %132 = arith.mulf %131, %47 : vector<8x128xf32>
    %cst_57 = arith.constant 0.0211267602 : f32
    %133 = vector.broadcast %cst_57 : f32 to vector<8x128xf32>
    %134 = arith.addf %133, %132 : vector<8x128xf32>
    %cst_58 = arith.constant 0.169014081 : f32
    %135 = vector.broadcast %cst_58 : f32 to vector<8x128xf32>
    %136 = arith.mulf %135, %40 : vector<8x128xf32>
    %cst_59 = arith.constant 0.0211267602 : f32
    %137 = vector.broadcast %cst_59 : f32 to vector<8x128xf32>
    %138 = arith.addf %137, %136 : vector<8x128xf32>
    %cst_60 = arith.constant 0.338028163 : f32
    %139 = vector.broadcast %cst_60 : f32 to vector<8x128xf32>
    %140 = arith.mulf %139, %85 : vector<8x128xf32>
    %141 = arith.addf %134, %140 : vector<8x128xf32>
    %cst_61 = arith.constant 0.338028163 : f32
    %142 = vector.broadcast %cst_61 : f32 to vector<8x128xf32>
    %143 = arith.mulf %142, %78 : vector<8x128xf32>
    %144 = arith.addf %138, %143 : vector<8x128xf32>
    %cst_62 = arith.constant 0.450704217 : f32
    %145 = vector.broadcast %cst_62 : f32 to vector<8x128xf32>
    %146 = arith.mulf %145, %129 : vector<8x128xf32>
    %147 = arith.addf %141, %146 : vector<8x128xf32>
    %cst_63 = arith.constant 0.450704217 : f32
    %148 = vector.broadcast %cst_63 : f32 to vector<8x128xf32>
    %149 = arith.mulf %148, %122 : vector<8x128xf32>
    %150 = arith.addf %144, %149 : vector<8x128xf32>
    %151 = arith.mulf %11, %147 : vector<8x128xf32>
    %152 = arith.addf %151, %12 : vector<8x128xf32>
    %153 = arith.mulf %15, %150 : vector<8x128xf32>
    %154 = arith.addf %153, %16 : vector<8x128xf32>
    %cst_64 = arith.constant 3.000000e+00 : f32
    %155 = vector.broadcast %cst_64 : f32 to vector<8x128xf32>
    %156 = arith.cmpf oge, %0, %155 : vector<8x128xf32>
    %cst_65 = arith.constant 0.166666672 : f32
    %157 = vector.broadcast %cst_65 : f32 to vector<8x128xf32>
    %158 = arith.mulf %130, %157 : vector<8x128xf32>
    %cst_66 = arith.constant 0.000000e+00 : f32
    %159 = vector.broadcast %cst_66 : f32 to vector<8x128xf32>
    %160 = arith.select %156, %158, %159 : vector<8x128xi1>, vector<8x128xf32>
    %161 = arith.addf %111, %160 : vector<8x128xf32>
    %162 = arith.mulf %160, %152 : vector<8x128xf32>
    %163 = arith.addf %113, %162 : vector<8x128xf32>
    %164 = arith.mulf %160, %154 : vector<8x128xf32>
    %165 = arith.addf %115, %164 : vector<8x128xf32>
    %cst_67 = arith.constant 5.000000e-01 : f32
    %166 = vector.broadcast %cst_67 : f32 to vector<8x128xf32>
    %167 = arith.mulf %166, %152 : vector<8x128xf32>
    %168 = math.tanh %167 : vector<8x128xf32>
    %cst_68 = arith.constant 5.000000e-01 : f32
    %169 = vector.broadcast %cst_68 : f32 to vector<8x128xf32>
    %170 = arith.mulf %169, %168 : vector<8x128xf32>
    %cst_69 = arith.constant 5.000000e-01 : f32
    %171 = vector.broadcast %cst_69 : f32 to vector<8x128xf32>
    %172 = arith.addf %171, %170 : vector<8x128xf32>
    %cst_70 = arith.constant 5.000000e-01 : f32
    %173 = vector.broadcast %cst_70 : f32 to vector<8x128xf32>
    %174 = arith.mulf %173, %154 : vector<8x128xf32>
    %175 = math.tanh %174 : vector<8x128xf32>
    %cst_71 = arith.constant 5.000000e-01 : f32
    %176 = vector.broadcast %cst_71 : f32 to vector<8x128xf32>
    %177 = arith.mulf %176, %175 : vector<8x128xf32>
    %cst_72 = arith.constant 5.000000e-01 : f32
    %178 = vector.broadcast %cst_72 : f32 to vector<8x128xf32>
    %179 = arith.addf %178, %177 : vector<8x128xf32>
    %180 = arith.mulf %130, %0 : vector<8x128xf32>
    %cst_73 = arith.constant 0.0764818341 : f32
    %181 = vector.broadcast %cst_73 : f32 to vector<8x128xf32>
    %182 = arith.mulf %181, %47 : vector<8x128xf32>
    %cst_74 = arith.constant 0.0076481835 : f32
    %183 = vector.broadcast %cst_74 : f32 to vector<8x128xf32>
    %184 = arith.addf %183, %182 : vector<8x128xf32>
    %cst_75 = arith.constant 0.0764818341 : f32
    %185 = vector.broadcast %cst_75 : f32 to vector<8x128xf32>
    %186 = arith.mulf %185, %40 : vector<8x128xf32>
    %cst_76 = arith.constant 0.0076481835 : f32
    %187 = vector.broadcast %cst_76 : f32 to vector<8x128xf32>
    %188 = arith.addf %187, %186 : vector<8x128xf32>
    %cst_77 = arith.constant 0.191204593 : f32
    %189 = vector.broadcast %cst_77 : f32 to vector<8x128xf32>
    %190 = arith.mulf %189, %85 : vector<8x128xf32>
    %191 = arith.addf %184, %190 : vector<8x128xf32>
    %cst_78 = arith.constant 0.191204593 : f32
    %192 = vector.broadcast %cst_78 : f32 to vector<8x128xf32>
    %193 = arith.mulf %192, %78 : vector<8x128xf32>
    %194 = arith.addf %188, %193 : vector<8x128xf32>
    %cst_79 = arith.constant 0.318674326 : f32
    %195 = vector.broadcast %cst_79 : f32 to vector<8x128xf32>
    %196 = arith.mulf %195, %129 : vector<8x128xf32>
    %197 = arith.addf %191, %196 : vector<8x128xf32>
    %cst_80 = arith.constant 0.318674326 : f32
    %198 = vector.broadcast %cst_80 : f32 to vector<8x128xf32>
    %199 = arith.mulf %198, %122 : vector<8x128xf32>
    %200 = arith.addf %194, %199 : vector<8x128xf32>
    %cst_81 = arith.constant 0.398342907 : f32
    %201 = vector.broadcast %cst_81 : f32 to vector<8x128xf32>
    %202 = arith.mulf %201, %179 : vector<8x128xf32>
    %203 = arith.addf %197, %202 : vector<8x128xf32>
    %cst_82 = arith.constant 0.398342907 : f32
    %204 = vector.broadcast %cst_82 : f32 to vector<8x128xf32>
    %205 = arith.mulf %204, %172 : vector<8x128xf32>
    %206 = arith.addf %200, %205 : vector<8x128xf32>
    %207 = arith.mulf %11, %203 : vector<8x128xf32>
    %208 = arith.addf %207, %12 : vector<8x128xf32>
    %209 = arith.mulf %15, %206 : vector<8x128xf32>
    %210 = arith.addf %209, %16 : vector<8x128xf32>
    %cst_83 = arith.constant 4.000000e+00 : f32
    %211 = vector.broadcast %cst_83 : f32 to vector<8x128xf32>
    %212 = arith.cmpf oge, %0, %211 : vector<8x128xf32>
    %cst_84 = arith.constant 0.0416666679 : f32
    %213 = vector.broadcast %cst_84 : f32 to vector<8x128xf32>
    %214 = arith.mulf %180, %213 : vector<8x128xf32>
    %cst_85 = arith.constant 0.000000e+00 : f32
    %215 = vector.broadcast %cst_85 : f32 to vector<8x128xf32>
    %216 = arith.select %212, %214, %215 : vector<8x128xi1>, vector<8x128xf32>
    %217 = arith.addf %161, %216 : vector<8x128xf32>
    %218 = arith.mulf %216, %208 : vector<8x128xf32>
    %219 = arith.addf %163, %218 : vector<8x128xf32>
    %220 = arith.mulf %216, %210 : vector<8x128xf32>
    %221 = arith.addf %165, %220 : vector<8x128xf32>
    %222 = tpu.reciprocal %217 {approx = true} : vector<8x128xf32> -> vector<8x128xf32>
    %223 = arith.mulf %217, %222 : vector<8x128xf32>
    %cst_86 = arith.constant 2.000000e+00 : f32
    %224 = vector.broadcast %cst_86 : f32 to vector<8x128xf32>
    %225 = arith.subf %224, %223 : vector<8x128xf32>
    %226 = arith.mulf %222, %225 : vector<8x128xf32>
    %227 = arith.mulf %219, %226 : vector<8x128xf32>
    %cst_87 = arith.constant 5.000000e-01 : f32
    %228 = vector.broadcast %cst_87 : f32 to vector<8x128xf32>
    %229 = arith.mulf %228, %227 : vector<8x128xf32>
    %230 = math.tanh %229 : vector<8x128xf32>
    %cst_88 = arith.constant 5.000000e-01 : f32
    %231 = vector.broadcast %cst_88 : f32 to vector<8x128xf32>
    %232 = arith.mulf %231, %230 : vector<8x128xf32>
    %cst_89 = arith.constant 5.000000e-01 : f32
    %233 = vector.broadcast %cst_89 : f32 to vector<8x128xf32>
    %234 = arith.subf %233, %232 : vector<8x128xf32>
    %c0_90 = arith.constant 0 : index
    %c0_91 = arith.constant 0 : index
    %235 = vector.load %arg10[%c0_90, %c0_91] : memref<8x128xf32, #tpu.memory_space<vmem>>, vector<8x128xf32>
    tpu.vector_store %arg10[%c0_90, %c0_91], %234 {strides = array<i32>} : memref<8x128xf32, #tpu.memory_space<vmem>>, vector<8x128xf32>,
    %236 = arith.mulf %221, %226 : vector<8x128xf32>
    %cst_92 = arith.constant 5.000000e-01 : f32
    %237 = vector.broadcast %cst_92 : f32 to vector<8x128xf32>
    %238 = arith.mulf %237, %236 : vector<8x128xf32>
    %239 = math.tanh %238 : vector<8x128xf32>
    %cst_93 = arith.constant 5.000000e-01 : f32
    %240 = vector.broadcast %cst_93 : f32 to vector<8x128xf32>
    %241 = arith.mulf %240, %239 : vector<8x128xf32>
    %cst_94 = arith.constant 5.000000e-01 : f32
    %242 = vector.broadcast %cst_94 : f32 to vector<8x128xf32>
    %243 = arith.subf %242, %241 : vector<8x128xf32>
    %c0_95 = arith.constant 0 : index
    %c0_96 = arith.constant 0 : index
    %244 = vector.load %arg11[%c0_95, %c0_96] : memref<8x128xf32, #tpu.memory_space<vmem>>, vector<8x128xf32>
    tpu.vector_store %arg11[%c0_95, %c0_96], %243 {strides = array<i32>} : memref<8x128xf32, #tpu.memory_space<vmem>>, vector<8x128xf32>,
    return
  }
  func.func @transform_0(%arg0: i32) -> (i32, i32) {
    %c0_i32 = arith.constant 0 : i32
    %c0_i32_0 = arith.constant 0 : i32
    return %c0_i32, %arg0 : i32, i32
  }
  func.func @transform_1(%arg0: i32) -> (i32, i32) {
    %c0_i32 = arith.constant 0 : i32
    %c0_i32_0 = arith.constant 0 : i32
    return %c0_i32, %arg0 : i32, i32
  }
  func.func @transform_2(%arg0: i32) -> (i32, i32) {
    %c0_i32 = arith.constant 0 : i32
    %c0_i32_0 = arith.constant 0 : i32
    return %c0_i32, %arg0 : i32, i32
  }
  func.func @transform_3(%arg0: i32) -> (i32, i32) {
    %c0_i32 = arith.constant 0 : i32
    %c0_i32_0 = arith.constant 0 : i32
    return %c0_i32, %arg0 : i32, i32
  }
  func.func @transform_4(%arg0: i32) -> (i32, i32) {
    %c0_i32 = arith.constant 0 : i32
    %c0_i32_0 = arith.constant 0 : i32
    return %c0_i32, %arg0 : i32, i32
  }
  func.func @transform_5(%arg0: i32) -> (i32, i32) {
    %c0_i32 = arith.constant 0 : i32
    %c0_i32_0 = arith.constant 0 : i32
    return %c0_i32, %arg0 : i32, i32
  }
  func.func @transform_6(%arg0: i32) -> (i32, i32) {
    %c0_i32 = arith.constant 0 : i32
    %c0_i32_0 = arith.constant 0 : i32
    return %c0_i32, %arg0 : i32, i32
  }
  func.func @transform_7(%arg0: i32) -> (i32, i32) {
    %c0_i32 = arith.constant 0 : i32
    %c0_i32_0 = arith.constant 0 : i32
    return %c0_i32, %arg0 : i32, i32
  }
  func.func @transform_8(%arg0: i32) -> (i32, i32) {
    %c0_i32 = arith.constant 0 : i32
    %c0_i32_0 = arith.constant 0 : i32
    return %c0_i32, %arg0 : i32, i32
  }
  func.func @transform_9(%arg0: i32) -> (i32, i32) {
    %c0_i32 = arith.constant 0 : i32
    %c0_i32_0 = arith.constant 0 : i32
    return %c0_i32, %arg0 : i32, i32
  }
  func.func @transform_10(%arg0: i32) -> (i32, i32) {
    %c0_i32 = arith.constant 0 : i32
    %c0_i32_0 = arith.constant 0 : i32
    return %c0_i32, %arg0 : i32, i32
  }
}

</mosaic_0001>

<llo_original>
// kernel: tpu_custom_call.1
$region0: #{tpu_custom_call.1}
  #allocation0 [shape = 'u32[]', space=smem, size = 0x4, offset = 0x4, fixed_abs, tag = 'smem constant byte address 0x4 - core index']
  #allocation1 [shape = 'u32[72,128]{1,0:T(1,128)}', space=vmem, size = 0x9000, scoped, tag = 'internal scratch']
  %s0 = inlined_call_operand.hbm [shape: f32[8,128], index: 0, kind: input, shape index: {}]
  %s1 = inlined_call_operand.hbm [shape: f32[8,128], index: 1, kind: input, shape index: {}]
  %s2 = inlined_call_operand.hbm [shape: f32[8,128], index: 2, kind: input, shape index: {}]
  %s3 = inlined_call_operand.hbm [shape: f32[8,128], index: 3, kind: input, shape index: {}]
  %s4 = inlined_call_operand.hbm [shape: f32[8,128], index: 4, kind: input, shape index: {}]
  %s5 = inlined_call_operand.hbm [shape: f32[8,128], index: 5, kind: input, shape index: {}]
  %s6 = inlined_call_operand.hbm [shape: f32[8,128], index: 6, kind: input, shape index: {}]
  %s7 = inlined_call_operand.hbm [shape: f32[8,128], index: 7, kind: input, shape index: {}]
  %s8 = inlined_call_operand.hbm [shape: f32[8,128], index: 8, kind: input, shape index: {}]
  %s9 = inlined_call_operand.hbm [shape: f32[8,128], index: 9, kind: output, shape index: {0}]
  %s10 = inlined_call_operand.hbm [shape: f32[8,128], index: 10, kind: output, shape index: {1}]
  %11 = xla_tuple %s9, %s10
  %s12 = sld [smem:[#allocation0]]
  $region90: #{tpu_custom_call.1} parent=0
    _
  %s14 = ssub.s32 1, %s12
  %s15 = scalar_select 0, %s14, %s12
  $region1: #{tpu_custom_call.1} parent=0
    #allocation2 [shape = 'u8[4096]{0}', space=vmem, size = 0x1000, scoped, tag = 'input window, operand 0, single buffered']
    #allocation3 [shape = 's32[1]{0}', space=sflag, size = 0x4, scoped, tag = 'scoped memory for tpu_custom_call.1']
    #allocation4 [shape = 's32[1]{0}', space=sflag, size = 0x4, scoped, tag = 'scoped memory for tpu_custom_call.1']
    #allocation5 [shape = 'u8[4096]{0}', space=vmem, size = 0x1000, scoped, tag = 'input window, operand 1, single buffered']
    #allocation6 [shape = 's32[1]{0}', space=sflag, size = 0x4, scoped, tag = 'scoped memory for tpu_custom_call.1']
    #allocation7 [shape = 'u8[4096]{0}', space=vmem, size = 0x1000, scoped, tag = 'input window, operand 2, single buffered']
    #allocation8 [shape = 'u8[4096]{0}', space=vmem, size = 0x1000, scoped, tag = 'input window, operand 3, single buffered']
    #allocation9 [shape = 's32[1]{0}', space=sflag, size = 0x4, scoped, tag = 'scoped memory for tpu_custom_call.1']
    #allocation10 [shape = 'u8[4096]{0}', space=vmem, size = 0x1000, scoped, tag = 'input window, operand 4, single buffered']
    #allocation11 [shape = 'u8[4096]{0}', space=vmem, size = 0x1000, scoped, tag = 'input window, operand 5, single buffered']
    #allocation12 [shape = 's32[1]{0}', space=sflag, size = 0x4, scoped, tag = 'scoped memory for tpu_custom_call.1']
    #allocation13 [shape = 'u8[4096]{0}', space=vmem, size = 0x1000, scoped, tag = 'input window, operand 6, single buffered']
    #allocation14 [shape = 'u8[4096]{0}', space=vmem, size = 0x1000, scoped, tag = 'input window, operand 7, single buffered']
    #allocation15 [shape = 's32[1]{0}', space=sflag, size = 0x4, scoped, tag = 'scoped memory for tpu_custom_call.1']
    #allocation16 [shape = 'u8[4096]{0}', space=vmem, size = 0x1000, scoped, tag = 'input window, operand 8, single buffered']
    #allocation17 [shape = 'u8[4096]{0}', space=vmem, size = 0x1000, scoped, tag = 'output window, operand 0, single buffered']
    #allocation18 [shape = 'u8[4096]{0}', space=vmem, size = 0x1000, scoped, tag = 'output window, operand 1, single buffered']
    #allocation19 [shape = 's32[1]{0}', space=sflag, size = 0x4, scoped, tag = 'scoped memory for tpu_custom_call.1']
    %16 = vsyncpa [#allocation3], 0
    %17 = vsyncpa [#allocation6], 0
    %18 = vsyncpa [#allocation9], 0
    %19 = vsyncpa [#allocation12], 0
    %20 = vsyncpa [#allocation15], 0
    %21 = vsyncpa [#allocation4], 0
    %22 = vsyncpa [#allocation19], 0
    // Predicated region
    $region2: #{tpu_custom_call.1} parent=1 // pred_check
      _
    $region3: #{tpu_custom_call.1} parent=1 // pred_check_branch
      %24 = sbr.rel (0) target = $region5
    $region4: #{tpu_custom_call.1} parent=1 // pred_region
      %26 = vsyncadd [#allocation3], 0
      %s28 = sshll.u32 %s0, 4
      %s29 = int_to_ptr.hbm [resolvable:$true] %s28
      %s30 = sshll.u32 [#allocation2], 4
      %s31 = int_to_ptr.vmem [resolvable:$true] %s30
      %33 = dma.hbm_to_vmem [thread:$0]  %s29, 128, %s31, [#allocation3]
    $region5: #{tpu_custom_call.1} parent=1 // pred_fallthru
      _
    // Predicated region
    $region6: #{tpu_custom_call.1} parent=1 // pred_check
      _
    $region7: #{tpu_custom_call.1} parent=1 // pred_check_branch
      %35 = sbr.rel (0) target = $region9
    $region8: #{tpu_custom_call.1} parent=1 // pred_region
      %37 = vsyncadd [#allocation6], 0
      %s39 = sshll.u32 %s1, 4
      %s40 = int_to_ptr.hbm [resolvable:$true] %s39
      %s41 = sshll.u32 [#allocation5], 4
      %s42 = int_to_ptr.vmem [resolvable:$true] %s41
      %44 = dma.hbm_to_vmem [thread:$0]  %s40, 128, %s42, [#allocation6]
    $region9: #{tpu_custom_call.1} parent=1 // pred_fallthru
      _
    // Predicated region
    $region10: #{tpu_custom_call.1} parent=1 // pred_check
      _
    $region11: #{tpu_custom_call.1} parent=1 // pred_check_branch
      %46 = sbr.rel (0) target = $region13
    $region12: #{tpu_custom_call.1} parent=1 // pred_region
      %48 = vsyncadd [#allocation6], 0
      %s50 = sshll.u32 %s2, 4
      %s51 = int_to_ptr.hbm [resolvable:$true] %s50
      %s52 = sshll.u32 [#allocation7], 4
      %s53 = int_to_ptr.vmem [resolvable:$true] %s52
      %55 = dma.hbm_to_vmem [thread:$0]  %s51, 128, %s53, [#allocation6]
    $region13: #{tpu_custom_call.1} parent=1 // pred_fallthru
      _
    // Predicated region
    $region14: #{tpu_custom_call.1} parent=1 // pred_check
      _
    $region15: #{tpu_custom_call.1} parent=1 // pred_check_branch
      %57 = sbr.rel (0) target = $region17
    $region16: #{tpu_custom_call.1} parent=1 // pred_region
      %59 = vsyncadd [#allocation9], 0
      %s61 = sshll.u32 %s3, 4
      %s62 = int_to_ptr.hbm [resolvable:$true] %s61
      %s63 = sshll.u32 [#allocation8], 4
      %s64 = int_to_ptr.vmem [resolvable:$true] %s63
      %66 = dma.hbm_to_vmem [thread:$0]  %s62, 128, %s64, [#allocation9]
    $region17: #{tpu_custom_call.1} parent=1 // pred_fallthru
      _
    // Predicated region
    $region18: #{tpu_custom_call.1} parent=1 // pred_check
      _
    $region19: #{tpu_custom_call.1} parent=1 // pred_check_branch
      %68 = sbr.rel (0) target = $region21
    $region20: #{tpu_custom_call.1} parent=1 // pred_region
      %70 = vsyncadd [#allocation9], 0
      %s72 = sshll.u32 %s4, 4
      %s73 = int_to_ptr.hbm [resolvable:$true] %s72
      %s74 = sshll.u32 [#allocation10], 4
      %s75 = int_to_ptr.vmem [resolvable:$true] %s74
      %77 = dma.hbm_to_vmem [thread:$0]  %s73, 128, %s75, [#allocation9]
    $region21: #{tpu_custom_call.1} parent=1 // pred_fallthru
      _
    // Predicated region
    $region22: #{tpu_custom_call.1} parent=1 // pred_check
      _
    $region23: #{tpu_custom_call.1} parent=1 // pred_check_branch
      %79 = sbr.rel (0) target = $region25
    $region24: #{tpu_custom_call.1} parent=1 // pred_region
      %81 = vsyncadd [#allocation12], 0
      %s83 = sshll.u32 %s5, 4
      %s84 = int_to_ptr.hbm [resolvable:$true] %s83
      %s85 = sshll.u32 [#allocation11], 4
      %s86 = int_to_ptr.vmem [resolvable:$true] %s85
      %88 = dma.hbm_to_vmem [thread:$0]  %s84, 128, %s86, [#allocation12]
    $region25: #{tpu_custom_call.1} parent=1 // pred_fallthru
      _
    // Predicated region
    $region26: #{tpu_custom_call.1} parent=1 // pred_check
      _
    $region27: #{tpu_custom_call.1} parent=1 // pred_check_branch
      %90 = sbr.rel (0) target = $region29
    $region28: #{tpu_custom_call.1} parent=1 // pred_region
      %92 = vsyncadd [#allocation12], 0
      %s94 = sshll.u32 %s6, 4
      %s95 = int_to_ptr.hbm [resolvable:$true] %s94
      %s96 = sshll.u32 [#allocation13], 4
      %s97 = int_to_ptr.vmem [resolvable:$true] %s96
      %99 = dma.hbm_to_vmem [thread:$0]  %s95, 128, %s97, [#allocation12]
    $region29: #{tpu_custom_call.1} parent=1 // pred_fallthru
      _
    // Predicated region
    $region30: #{tpu_custom_call.1} parent=1 // pred_check
      _
    $region31: #{tpu_custom_call.1} parent=1 // pred_check_branch
      %101 = sbr.rel (0) target = $region33
    $region32: #{tpu_custom_call.1} parent=1 // pred_region
      %103 = vsyncadd [#allocation15], 0
      %s105 = sshll.u32 %s7, 4
      %s106 = int_to_ptr.hbm [resolvable:$true] %s105
      %s107 = sshll.u32 [#allocation14], 4
      %s108 = int_to_ptr.vmem [resolvable:$true] %s107
      %110 = dma.hbm_to_vmem [thread:$0]  %s106, 128, %s108, [#allocation15]
    $region33: #{tpu_custom_call.1} parent=1 // pred_fallthru
      _
    // Predicated region
    $region34: #{tpu_custom_call.1} parent=1 // pred_check
      _
    $region35: #{tpu_custom_call.1} parent=1 // pred_check_branch
      %112 = sbr.rel (0) target = $region37
    $region36: #{tpu_custom_call.1} parent=1 // pred_region
      %114 = vsyncadd [#allocation15], 0
      %s116 = sshll.u32 %s8, 4
      %s117 = int_to_ptr.hbm [resolvable:$true] %s116
      %s118 = sshll.u32 [#allocation16], 4
      %s119 = int_to_ptr.vmem [resolvable:$true] %s118
      %121 = dma.hbm_to_vmem [thread:$0]  %s117, 128, %s119, [#allocation15]
    $region37: #{tpu_custom_call.1} parent=1 // pred_fallthru
      _
    // Predicated region
    $region38: #{tpu_custom_call.1} parent=1 // pred_check
      _
    $region39: #{tpu_custom_call.1} parent=1 // pred_check_branch
      %123 = sbr.rel (0) target = $region41
    $region40: #{tpu_custom_call.1} parent=1 // pred_region
      %125 = dma.done [#allocation3], 128
    $region41: #{tpu_custom_call.1} parent=1 // pred_fallthru
      _
    // Predicated region
    $region42: #{tpu_custom_call.1} parent=1 // pred_check
      _
    $region43: #{tpu_custom_call.1} parent=1 // pred_check_branch
      %127 = sbr.rel (0) target = $region45
    $region44: #{tpu_custom_call.1} parent=1 // pred_region
      %129 = dma.done [#allocation6], 128
    $region45: #{tpu_custom_call.1} parent=1 // pred_fallthru
      _
    // Predicated region
    $region46: #{tpu_custom_call.1} parent=1 // pred_check
      _
    $region47: #{tpu_custom_call.1} parent=1 // pred_check_branch
      %131 = sbr.rel (0) target = $region49
    $region48: #{tpu_custom_call.1} parent=1 // pred_region
      %133 = dma.done [#allocation6], 128
    $region49: #{tpu_custom_call.1} parent=1 // pred_fallthru
      _
    // Predicated region
    $region50: #{tpu_custom_call.1} parent=1 // pred_check
      _
    $region51: #{tpu_custom_call.1} parent=1 // pred_check_branch
      %135 = sbr.rel (0) target = $region53
    $region52: #{tpu_custom_call.1} parent=1 // pred_region
      %137 = dma.done [#allocation9], 128
    $region53: #{tpu_custom_call.1} parent=1 // pred_fallthru
      _
    // Predicated region
    $region54: #{tpu_custom_call.1} parent=1 // pred_check
      _
    $region55: #{tpu_custom_call.1} parent=1 // pred_check_branch
      %139 = sbr.rel (0) target = $region57
    $region56: #{tpu_custom_call.1} parent=1 // pred_region
      %141 = dma.done [#allocation9], 128
    $region57: #{tpu_custom_call.1} parent=1 // pred_fallthru
      _
    // Predicated region
    $region58: #{tpu_custom_call.1} parent=1 // pred_check
      _
    $region59: #{tpu_custom_call.1} parent=1 // pred_check_branch
      %143 = sbr.rel (0) target = $region61
    $region60: #{tpu_custom_call.1} parent=1 // pred_region
      %145 = dma.done [#allocation12], 128
    $region61: #{tpu_custom_call.1} parent=1 // pred_fallthru
      _
    // Predicated region
    $region62: #{tpu_custom_call.1} parent=1 // pred_check
      _
    $region63: #{tpu_custom_call.1} parent=1 // pred_check_branch
      %147 = sbr.rel (0) target = $region65
    $region64: #{tpu_custom_call.1} parent=1 // pred_region
      %149 = dma.done [#allocation12], 128
    $region65: #{tpu_custom_call.1} parent=1 // pred_fallthru
      _
    // Predicated region
    $region66: #{tpu_custom_call.1} parent=1 // pred_check
      _
    $region67: #{tpu_custom_call.1} parent=1 // pred_check_branch
      %151 = sbr.rel (0) target = $region69
    $region68: #{tpu_custom_call.1} parent=1 // pred_region
      %153 = dma.done [#allocation15], 128
    $region69: #{tpu_custom_call.1} parent=1 // pred_fallthru
      _
    // Predicated region
    $region70: #{tpu_custom_call.1} parent=1 // pred_check
      _
    $region71: #{tpu_custom_call.1} parent=1 // pred_check_branch
      %155 = sbr.rel (0) target = $region73
    $region72: #{tpu_custom_call.1} parent=1 // pred_region
      %157 = dma.done [#allocation15], 128
    $region73: #{tpu_custom_call.1} parent=1 // pred_fallthru
      _
    %v158 = vld [vmem:[#allocation2] sm:$0xff]
    %v159 = vld [vmem:[#allocation5] sm:$0xff]
    %v160 = vld [vmem:[#allocation7] sm:$0xff]
    %v161 = vld [vmem:[#allocation8] sm:$0xff]
    %v162 = vld [vmem:[#allocation10] sm:$0xff]
    %v163 = vld [vmem:[#allocation11] sm:$0xff]
    %v164 = vld [vmem:[#allocation13] sm:$0xff]
    %v165 = vld [vmem:[#allocation14] sm:$0xff]
    %v166 = vld [vmem:[#allocation16] sm:$0xff]
    %v167 = vsub.f32 %v159, %v161
    %v168 = vsub.f32 %v160, %v162
    %v169 = vsub.f32 %v167, %v168
    %v170 = vsub.f32 %v163, %v165
    %v171 = vsub.f32 %v164, %v166
    %v172 = vsub.f32 %v170, %v171
    %v173 = vsub.f32 0.0, %v158
    %v174 = vmul.f32 %v173, 1.442695
    %v175 = vpow.pop %v174
    %v176 = vmul.f32 %v169, 0.5
    %v177 = vadd.f32 %v176, %v168
    %v178 = vmul.f32 %v172, 0.5
    %v179 = vadd.f32 %v178, %v171
    %vm180 = vcmp.ge.f32.partialorder %v158, 0.0
    %v181 = vsel %vm180, %v175, 0.0
    %v182 = vmul.f32 %v181, %v177
    %v183 = vmul.f32 %v181, %v179
    %v184 = vmul.f32 %v177, 0.5
    %v185 = vtanh.pop %v184
    %v186 = vmul.f32 %v185, 0.5
    %v187 = vadd.f32 %v186, 0.5
    %v188 = vmul.f32 %v179, 0.5
    %v189 = vtanh.pop %v188
    %v190 = vmul.f32 %v189, 0.5
    %v191 = vadd.f32 %v190, 0.5
    %v192 = vmul.f32 %v175, %v158
    %v193 = vmul.f32 %v191, 0.6666667
    %v194 = vadd.f32 %v193, 0.16666667
    %v195 = vmul.f32 %v187, 0.6666667
    %v196 = vadd.f32 %v195, 0.16666667
    %v197 = vmul.f32 %v169, %v194
    %v198 = vadd.f32 %v197, %v168
    %v199 = vmul.f32 %v172, %v196
    %v200 = vadd.f32 %v199, %v171
    %vm201 = vcmp.ge.f32.partialorder %v158, 1.0
    %v202 = vsel %vm201, %v192, 0.0
    %v203 = vadd.f32 %v181, %v202
    %v204 = vmul.f32 %v202, %v198
    %v205 = vadd.f32 %v182, %v204
    %v206 = vmul.f32 %v202, %v200
    %v207 = vadd.f32 %v183, %v206
    %v208 = vmul.f32 %v198, 0.5
    %v209 = vtanh.pop %v208
    %v210 = vmul.f32 %v209, 0.5
    %v211 = vadd.f32 %v210, 0.5
    %v212 = vmul.f32 %v200, 0.5
    %v213 = vtanh.pop %v212
    %v214 = vmul.f32 %v213, 0.5
    %v215 = vadd.f32 %v214, 0.5
    %v216 = vmul.f32 %v192, %v158
    %v217 = vmul.f32 %v191, 0.3529412
    %v218 = vadd.f32 %v217, 0.05882353
    %v219 = vmul.f32 %v187, 0.3529412
    %v220 = vadd.f32 %v219, 0.05882353
    %v221 = vmul.f32 %v215, 0.5294118
    %v222 = vadd.f32 %v218, %v221
    %v223 = vmul.f32 %v211, 0.5294118
    %v224 = vadd.f32 %v220, %v223
    %v225 = vmul.f32 %v169, %v222
    %v226 = vadd.f32 %v225, %v168
    %v227 = vmul.f32 %v172, %v224
    %v228 = vadd.f32 %v227, %v171
    %vm229 = vcmp.ge.f32.partialorder %v158, 2.0
    %v230 = vmul.f32 %v216, 0.5
    %v231 = vsel %vm229, %v230, 0.0
    %v232 = vadd.f32 %v203, %v231
    %v233 = vmul.f32 %v231, %v226
    %v234 = vadd.f32 %v205, %v233
    %v235 = vmul.f32 %v231, %v228
    %v236 = vadd.f32 %v207, %v235
    %v237 = vmul.f32 %v226, 0.5
    %v238 = vtanh.pop %v237
    %v239 = vmul.f32 %v238, 0.5
    %v240 = vadd.f32 %v239, 0.5
    %v241 = vmul.f32 %v228, 0.5
    %v242 = vtanh.pop %v241
    %v243 = vmul.f32 %v242, 0.5
    %v244 = vadd.f32 %v243, 0.5
    %v245 = vmul.f32 %v216, %v158
    %v246 = vmul.f32 %v191, 0.16901408
    %v247 = vadd.f32 %v246, 0.02112676
    %v248 = vmul.f32 %v187, 0.16901408
    %v249 = vadd.f32 %v248, 0.02112676
    %v250 = vmul.f32 %v215, 0.33802816
    %v251 = vadd.f32 %v247, %v250
    %v252 = vmul.f32 %v211, 0.33802816
    %v253 = vadd.f32 %v249, %v252
    %v254 = vmul.f32 %v244, 0.45070422
    %v255 = vadd.f32 %v251, %v254
    %v256 = vmul.f32 %v240, 0.45070422
    %v257 = vadd.f32 %v253, %v256
    %v258 = vmul.f32 %v169, %v255
    %v259 = vadd.f32 %v258, %v168
    %v260 = vmul.f32 %v172, %v257
    %v261 = vadd.f32 %v260, %v171
    %vm262 = vcmp.ge.f32.partialorder %v158, 3.0
    %v263 = vmul.f32 %v245, 0.16666667
    %v264 = vsel %vm262, %v263, 0.0
    %v265 = vadd.f32 %v232, %v264
    %v266 = vmul.f32 %v264, %v259
    %v267 = vadd.f32 %v234, %v266
    %v268 = vmul.f32 %v264, %v261
    %v269 = vadd.f32 %v236, %v268
    %v270 = vmul.f32 %v259, 0.5
    %v271 = vtanh.pop %v270
    %v272 = vmul.f32 %v271, 0.5
    %v273 = vadd.f32 %v272, 0.5
    %v274 = vmul.f32 %v261, 0.5
    %v275 = vtanh.pop %v274
    %v276 = vmul.f32 %v275, 0.5
    %v277 = vadd.f32 %v276, 0.5
    %v278 = vmul.f32 %v245, %v158
    %v279 = vmul.f32 %v191, 0.076481834
    %v280 = vadd.f32 %v279, 0.0076481835
    %v281 = vmul.f32 %v187, 0.076481834
    %v282 = vadd.f32 %v281, 0.0076481835
    %v283 = vmul.f32 %v215, 0.1912046
    %v284 = vadd.f32 %v280, %v283
    %v285 = vmul.f32 %v211, 0.1912046
    %v286 = vadd.f32 %v282, %v285
    %v287 = vmul.f32 %v244, 0.31867433
    %v288 = vadd.f32 %v284, %v287
    %v289 = vmul.f32 %v240, 0.31867433
    %v290 = vadd.f32 %v286, %v289
    %v291 = vmul.f32 %v277, 0.3983429
    %v292 = vadd.f32 %v288, %v291
    %v293 = vmul.f32 %v273, 0.3983429
    %v294 = vadd.f32 %v290, %v293
    %v295 = vmul.f32 %v169, %v292
    %v296 = vadd.f32 %v295, %v168
    %v297 = vmul.f32 %v172, %v294
    %v298 = vadd.f32 %v297, %v171
    %vm299 = vcmp.ge.f32.partialorder %v158, 4.0
    %v300 = vmul.f32 %v278, 0.041666668
    %v301 = vsel %vm299, %v300, 0.0
    %v302 = vadd.f32 %v265, %v301
    %v303 = vmul.f32 %v301, %v296
    %v304 = vadd.f32 %v267, %v303
    %v305 = vmul.f32 %v301, %v298
    %v306 = vadd.f32 %v269, %v305
    %v307 = vrcp.pop %v302
    %v308 = vmul.f32 %v302, %v307
    %v309 = vsub.f32 2.0, %v308
    %v310 = vmul.f32 %v307, %v309
    %v311 = vmul.f32 %v304, %v310
    %v312 = vmul.f32 %v311, 0.5
    %v313 = vtanh.pop %v312
    %v314 = vmul.f32 %v313, 0.5
    %v315 = vsub.f32 0.5, %v314
    %316 = vst [vmem:[#allocation17] sm:$0xff] %v315
    %v317 = vmul.f32 %v306, %v310
    %v318 = vmul.f32 %v317, 0.5
    %v319 = vtanh.pop %v318
    %v320 = vmul.f32 %v319, 0.5
    %v321 = vsub.f32 0.5, %v320
    %322 = vst [vmem:[#allocation18] sm:$0xff] %v321
    // Predicated region
    $region74: #{tpu_custom_call.1} parent=1 // pred_check
      _
    $region75: #{tpu_custom_call.1} parent=1 // pred_check_branch
      %324 = sbr.rel (0) target = $region77
    $region76: #{tpu_custom_call.1} parent=1 // pred_region
      %326 = vsyncadd [#allocation4], 0
      %s328 = sshll.u32 [#allocation17], 4
      %s329 = int_to_ptr.vmem [resolvable:$true] %s328
      %s330 = sshll.u32 %s9, 4
      %s331 = int_to_ptr.hbm [resolvable:$true] %s330
      %333 = dma.vmem_to_hbm [thread:$0]  %s329, 128, %s331, [#allocation4]
    $region77: #{tpu_custom_call.1} parent=1 // pred_fallthru
      _
    // Predicated region
    $region78: #{tpu_custom_call.1} parent=1 // pred_check
      _
    $region79: #{tpu_custom_call.1} parent=1 // pred_check_branch
      %335 = sbr.rel (0) target = $region81
    $region80: #{tpu_custom_call.1} parent=1 // pred_region
      %337 = vsyncadd [#allocation19], 0
      %s339 = sshll.u32 [#allocation18], 4
      %s340 = int_to_ptr.vmem [resolvable:$true] %s339
      %s341 = sshll.u32 %s10, 4
      %s342 = int_to_ptr.hbm [resolvable:$true] %s341
      %344 = dma.vmem_to_hbm [thread:$0]  %s340, 128, %s342, [#allocation19]
    $region81: #{tpu_custom_call.1} parent=1 // pred_fallthru
      _
    // Predicated region
    $region82: #{tpu_custom_call.1} parent=1 // pred_check
      _
    $region83: #{tpu_custom_call.1} parent=1 // pred_check_branch
      %346 = sbr.rel (0) target = $region85
    $region84: #{tpu_custom_call.1} parent=1 // pred_region
      %348 = dma.done [#allocation4], 128
    $region85: #{tpu_custom_call.1} parent=1 // pred_fallthru
      _
    // Predicated region
    $region86: #{tpu_custom_call.1} parent=1 // pred_check
      _
    $region87: #{tpu_custom_call.1} parent=1 // pred_check_branch
      %350 = sbr.rel (0) target = $region89
    $region88: #{tpu_custom_call.1} parent=1 // pred_region
      %352 = dma.done [#allocation19], 128
    $region89: #{tpu_custom_call.1} parent=1 // pred_fallthru
      _
    %353 = vsyncpa [#allocation3], 1
    %354 = vsyncpa [#allocation6], 1
    %355 = vsyncpa [#allocation9], 1
    %356 = vsyncpa [#allocation12], 1
    %357 = vsyncpa [#allocation15], 1
    %358 = vsyncpa [#allocation4], 1
    %359 = vsyncpa [#allocation19], 1

</llo_original>
